<compile_context>
chip_gen: v7x
topology: tpu7x:2x2x1
jax: 0.10.0
libtpu: 0.0.40
codegen_flags: <defaults>
</compile_context>

<pallas_src>
import jax
import jax.numpy as jnp
from jax.experimental import pallas as pl
from jax.experimental.pallas import tpu as pltpu


def _round_up(x: int, m: int) -> int:
    return (x + m - 1) // m * m


def _cdiv(a: int, b: int) -> int:
    return (a + b - 1) // b


def _vmem_budget_bytes() -> int:
    """~85% of physical per-core VMEM (generation-aware), with a safe fallback."""
    cap = 0
    try:
        cap = int(pltpu.get_tpu_info().vmem_capacity_bytes)
    except Exception:
        cap = 0
    if cap <= 0:
        cap = 64 << 20  # conservative fallback: v7x physical per-core VMEM
    return int(cap * 0.85)


def _disc_kernel(x_ref, w1_ref, b1_ref, w2_ref, b2_ref, w3_ref, b3_ref, out_ref):
    """One batch tile: 2 MXU matmuls + relu + skip-add + (1,H)x(TB,H)^T head + sigmoid."""
    x = x_ref[...]
    if x.dtype != w1_ref.dtype:
        x = x.astype(w1_ref.dtype)        # VPU cast, hidden under the x DMA

    # h1 = relu(x @ W1 + b1); f32 accumulation, bias/relu in f32.
    h1 = jnp.dot(x, w1_ref[...], preferred_element_type=jnp.float32)
    h1 = jnp.maximum(h1 + b1_ref[...], 0.0)                          # (TB, H) f32

    # h2 = relu(h1 @ W2 + b2)
    h2 = jnp.dot(h1.astype(w2_ref.dtype), w2_ref[...],
                 preferred_element_type=jnp.float32)
    h2 = jnp.maximum(h2 + b2_ref[...], 0.0)                          # (TB, H) f32

    # TODO(synk): dropout is identity here (eval-mode semantics); training-mode
    # dropout would mask h2 using pltpu.prng_seed / pltpu.prng_random_bits.
    skip = h2 + h1                                                   # (TB, H) f32

    # l3 has out_features == 1: contract W3 (1,H) against skip (TB,H) on H so
    # the result is the lane-dense row (1, TB) -> unmasked full-lane stores.
    logits = jax.lax.dot_general(
        w3_ref[...], skip, (((1,), (1,)), ((), ())),
        preferred_element_type=jnp.float32) + b3_ref[...]            # (1, TB)
    out_ref[...] = jax.nn.sigmoid(logits)


def fc_skipconnect_discriminator(x_nchw, params, *, batch_tile=2048, matmul_dtype=None):
    """Flatten NCHW input and run the batch-gridded Pallas kernel.

    For the full HBM-bandwidth win on v5e/v6e/v7x, feed x already in bf16
    (the weights then follow automatically); we never cast x in the wrapper.
    """
    w1, b1, w2, b2, w3, b3 = params

    B = x_nchw.shape[0]
    xflat = x_nchw.reshape(B, -1)                    # pure reshape: no copy, no cast
    D = xflat.shape[1]
    H = w1.shape[1]

    # Batch rows only need 8-alignment (sublane); pad only when required.
    Bp = _round_up(B, 8)
    if Bp != B:
        xflat = jnp.pad(xflat, ((0, Bp - B), (0, 0)))

    # Weights follow x's dtype (tiny + resident, so the cast is free); an
    # explicit matmul_dtype overrides (x is then cast *inside* the kernel).
    if matmul_dtype is not None:
        compute_dtype = jnp.dtype(matmul_dtype)
    elif xflat.dtype.name == "bfloat16":
        compute_dtype = jnp.bfloat16
    else:
        compute_dtype = jnp.float32

    w1c = w1.astype(compute_dtype)                   # (D, H)
    w2c = w2.astype(compute_dtype)                   # (H, H)
    w3r = w3.reshape(1, H).astype(jnp.float32)       # (1, H)
    b1f = b1.reshape(1, H).astype(jnp.float32)
    b2f = b2.reshape(1, H).astype(jnp.float32)
    b3f = b3.reshape(1, 1).astype(jnp.float32)

    x_item = xflat.dtype.itemsize
    param_bytes = int(w1c.size * w1c.dtype.itemsize + w2c.size * w2c.dtype.itemsize
                      + (b1f.size + b2f.size + w3r.size + b3f.size) * 4)

    # --- batch-tile sizing (generation-aware) --------------------------------
    budget = _vmem_budget_bytes()
    # Per batch row in VMEM: x tile (double-buffered) + f32 intermediates
    # (h1/h2/skip + slack) + out row (double-buffered).
    per_row = 2 * D * x_item + 4 * H * 4 + 2 * 4
    avail = budget - 2 * param_bytes - (4 << 20)     # params double-buffered + slack
    tb_vmem = max(128, (max(avail, 0) // per_row) // 128 * 128)
    # Target >= ~4 grid steps so megacore (v7x) shards and the DMA pipeline
    # has steps to overlap; keep TB a multiple of 128 in the multi-tile case.
    tb_steps = _round_up(_cdiv(Bp, 4), 128)
    bt = max(128, (int(batch_tile) // 128) * 128)
    tb_cap = min(bt, tb_vmem, tb_steps)
    if tb_cap >= Bp:
        TB, ntiles = Bp, 1                           # single tile: TB == array dim
    else:
        TB, ntiles = tb_cap, _cdiv(Bp, tb_cap)       # TB % 128 == 0; last tile ragged

    resident = lambda i: (0, 0)                      # params stay in VMEM across steps

    cost = pl.CostEstimate(
        flops=2 * Bp * D * H + 2 * Bp * H * H + 2 * Bp * H,
        transcendentals=Bp,                          # sigmoid exp
        bytes_accessed=int(xflat.size) * x_item + param_bytes + Bp * 4,
    )

    out = pl.pallas_call(
        _disc_kernel,
        out_shape=jax.ShapeDtypeStruct((1, ntiles * TB), jnp.float32),
        grid=(ntiles,),
        in_specs=[
            pl.BlockSpec((TB, D), lambda i: (i, 0)),     # x: streamed + pipelined
            pl.BlockSpec((D, H), resident),              # W1
            pl.BlockSpec((1, H), resident),              # b1
            pl.BlockSpec((H, H), resident),              # W2
            pl.BlockSpec((1, H), resident),              # b2
            pl.BlockSpec((1, H), resident),              # W3 row
            pl.BlockSpec((1, 1), resident),              # b3
        ],
        out_specs=pl.BlockSpec((1, TB), lambda i: (0, i)),   # lane-dense output row
        compiler_params=pltpu.CompilerParams(
            dimension_semantics=("parallel",),           # megacore sharding on v7x
            vmem_limit_bytes=int(budget),
        ),
        cost_estimate=cost,
    )(xflat, w1c, b1f, w2c, b2f, w3r, b3f)

    return out[0, :B].reshape(B, 1)                      # drop padded / ragged tail


def init_params(key, input_feature_dim, num_hidden_units):
    """Deterministic parameter init matching nn.Linear shapes.

    PyTorch Linear stores weight as (out, in); we keep the transposed (in, out)
    layout so the kernel does x @ W. Biases kept 2-D for broadcasting.
    """
    k1, k2, k3, k4, k5, k6 = jax.random.split(key, 6)

    def uniform(k, shape, fan_in):
        bound = 1.0 / jnp.sqrt(fan_in)
        return jax.random.uniform(k, shape, jnp.float32, -bound, bound)

    D, H = input_feature_dim, num_hidden_units
    w1 = uniform(k1, (D, H), D)
    b1 = uniform(k2, (1, H), D)
    w2 = uniform(k3, (H, H), H)
    b2 = uniform(k4, (1, H), H)
    w3 = uniform(k5, (H, 1), H)
    b3 = uniform(k6, (1, 1), H)
    return (w1, b1, w2, b2, w3, b3)


def reference_forward(x_nchw, params):
    """Pure-JAX reference of the PyTorch forward (eval mode)."""
    w1, b1, w2, b2, w3, b3 = params
    x = x_nchw.reshape(x_nchw.shape[0], -1).astype(jnp.float32)
    h1 = jax.nn.relu(x @ w1 + b1)
    h2 = jax.nn.relu(h1 @ w2 + b2)
    logits = (h2 + h1) @ w3 + b3
    return jax.nn.sigmoid(logits)


if __name__ == "__main__":
    # Small shapes consistent with the module: NCHW input flattened to D.
    B, C, Hs, Ws = 2, 4, 16, 16
    D = C * Hs * Ws            # input_feature_dim = 1024
    H = 32                     # num_hidden_units

    key = jax.random.PRNGKey(0)
    kx, kp = jax.random.split(key)
    x = jax.random.normal(kx, (B, C, Hs, Ws), jnp.float32)
    params = init_params(kp, D, H)
    ref = reference_forward(x, params)

    # 1) f32 path: exact semantics of the PyTorch module (tight tolerance).
    out = jax.block_until_ready(fc_skipconnect_discriminator(x, params))
    assert out.shape == (B, 1)
    assert jnp.allclose(out, ref, atol=1e-5, rtol=1e-5)

    # 2) bf16 streaming path: x arrives in bf16 from the producer (no wrapper
    #    cast pass); weights follow, accumulation/epilogue stay f32.
    out_bf16 = jax.block_until_ready(
        fc_skipconnect_discriminator(x.astype(jnp.bfloat16), params))
    assert out_bf16.shape == (B, 1)
    assert jnp.allclose(out_bf16, ref, atol=5e-2, rtol=5e-2)

    # 3) Multi-tile grid (lane-dense out blocks), non-multiple-of-8 batch and a
    #    ragged final x tile (300 -> pad to 304 rows, 3 tiles of TB=128).
    B2 = 300
    x2 = jax.random.normal(jax.random.PRNGKey(1), (B2, C, Hs, Ws), jnp.float32)
    out2 = jax.block_until_ready(
        fc_skipconnect_discriminator(x2, params, batch_tile=128))
    assert out2.shape == (B2, 1)
    assert jnp.allclose(out2, reference_forward(x2, params), atol=1e-5, rtol=1e-5)

    print("KERNEL_OK")
</pallas_src>

<mosaic_0001>
module attributes {stable_mosaic.version = 11 : i64} {
  func.func @_disc_kernel(%arg0: i32, %arg1: memref<8x1024xf32, #tpu.memory_space<vmem>>, %arg2: memref<1024x32xf32, #tpu.memory_space<vmem>>, %arg3: memref<1x32xf32, #tpu.memory_space<vmem>>, %arg4: memref<32x32xf32, #tpu.memory_space<vmem>>, %arg5: memref<1x32xf32, #tpu.memory_space<vmem>>, %arg6: memref<1x32xf32, #tpu.memory_space<vmem>>, %arg7: memref<1x1xf32, #tpu.memory_space<vmem>>, %arg8: memref<1x8xf32, #tpu.memory_space<vmem>>) attributes {dimension_semantics = [#tpu.dimension_semantics<parallel>], iteration_bounds = array<i64: 1>, scalar_prefetch = 0 : i64, scratch_operands = 0 : i64, tpu.core_type = #tpu.core_type<tc>, window_params = [{transform_indices = @transform_0, window_bounds = array<i64: 8, 1024>}, {pipeline_mode = #tpu.pipeline_mode<synchronous>, transform_indices = @transform_1, window_bounds = array<i64: 1024, 32>}, {pipeline_mode = #tpu.pipeline_mode<synchronous>, transform_indices = @transform_2, window_bounds = array<i64: 1, 32>}, {pipeline_mode = #tpu.pipeline_mode<synchronous>, transform_indices = @transform_3, window_bounds = array<i64: 32, 32>}, {pipeline_mode = #tpu.pipeline_mode<synchronous>, transform_indices = @transform_4, window_bounds = array<i64: 1, 32>}, {pipeline_mode = #tpu.pipeline_mode<synchronous>, transform_indices = @transform_5, window_bounds = array<i64: 1, 32>}, {pipeline_mode = #tpu.pipeline_mode<synchronous>, transform_indices = @transform_6, window_bounds = array<i64: 1, 1>}, {transform_indices = @transform_7, window_bounds = array<i64: 1, 8>}]} {
    %c0 = arith.constant 0 : index
    %c0_0 = arith.constant 0 : index
    %0 = vector.load %arg1[%c0, %c0_0] : memref<8x1024xf32, #tpu.memory_space<vmem>>, vector<8x1024xf32>
    %c0_1 = arith.constant 0 : index
    %c0_2 = arith.constant 0 : index
    %1 = vector.load %arg2[%c0_1, %c0_2] : memref<1024x32xf32, #tpu.memory_space<vmem>>, vector<1024x32xf32>
    %cst = arith.constant dense<0.000000e+00> : vector<8x32xf32>
    %2 = tpu.matmul %0, %1, %cst {dimension_numbers = #tpu.dot_dimension_numbers<[1], [0], [0], [1], [0, 0, 1, 1], [], []>} : vector<8x1024xf32>, vector<1024x32xf32>, vector<8x32xf32> -> vector<8x32xf32>
    %c0_3 = arith.constant 0 : index
    %c0_4 = arith.constant 0 : index
    %3 = vector.load %arg3[%c0_3, %c0_4] : memref<1x32xf32, #tpu.memory_space<vmem>>, vector<1x32xf32>
    %4 = vector.broadcast %3 : vector<1x32xf32> to vector<8x32xf32>
    %5 = arith.addf %2, %4 : vector<8x32xf32>
    %cst_5 = arith.constant 0.000000e+00 : f32
    %6 = vector.broadcast %cst_5 : f32 to vector<8x32xf32>
    %7 = arith.maximumf %5, %6 : vector<8x32xf32>
    %c0_6 = arith.constant 0 : index
    %c0_7 = arith.constant 0 : index
    %8 = vector.load %arg4[%c0_6, %c0_7] : memref<32x32xf32, #tpu.memory_space<vmem>>, vector<32x32xf32>
    %cst_8 = arith.constant dense<0.000000e+00> : vector<8x32xf32>
    %9 = tpu.matmul %7, %8, %cst_8 {dimension_numbers = #tpu.dot_dimension_numbers<[1], [0], [0], [1], [0, 0, 1, 1], [], []>} : vector<8x32xf32>, vector<32x32xf32>, vector<8x32xf32> -> vector<8x32xf32>
    %c0_9 = arith.constant 0 : index
    %c0_10 = arith.constant 0 : index
    %10 = vector.load %arg5[%c0_9, %c0_10] : memref<1x32xf32, #tpu.memory_space<vmem>>, vector<1x32xf32>
    %11 = vector.broadcast %10 : vector<1x32xf32> to vector<8x32xf32>
    %12 = arith.addf %9, %11 : vector<8x32xf32>
    %cst_11 = arith.constant 0.000000e+00 : f32
    %13 = vector.broadcast %cst_11 : f32 to vector<8x32xf32>
    %14 = arith.maximumf %12, %13 : vector<8x32xf32>
    %15 = arith.addf %14, %7 : vector<8x32xf32>
    %c0_12 = arith.constant 0 : index
    %c0_13 = arith.constant 0 : index
    %16 = vector.load %arg6[%c0_12, %c0_13] : memref<1x32xf32, #tpu.memory_space<vmem>>, vector<1x32xf32>
    %cst_14 = arith.constant dense<0.000000e+00> : vector<1x8xf32>
    %17 = tpu.matmul %16, %15, %cst_14 {dimension_numbers = #tpu.dot_dimension_numbers<[1], [1], [0], [0], [0, 0, 1, 0], [], []>} : vector<1x32xf32>, vector<8x32xf32>, vector<1x8xf32> -> vector<1x8xf32>
    %c0_15 = arith.constant 0 : index
    %c0_16 = arith.constant 0 : index
    %18 = vector.load %arg7[%c0_15, %c0_16] : memref<1x1xf32, #tpu.memory_space<vmem>>, vector<1x1xf32>
    %19 = vector.broadcast %18 : vector<1x1xf32> to vector<1x8xf32>
    %20 = arith.addf %17, %19 : vector<1x8xf32>
    %21 = arith.negf %20 : vector<1x8xf32>
    %22 = math.exp %21 : vector<1x8xf32>
    %cst_17 = arith.constant 1.000000e+00 : f32
    %23 = vector.broadcast %cst_17 : f32 to vector<1x8xf32>
    %24 = arith.addf %23, %22 : vector<1x8xf32>
    %25 = arith.divf %23, %24 : vector<1x8xf32>
    %c0_18 = arith.constant 0 : index
    %c0_19 = arith.constant 0 : index
    %26 = vector.load %arg8[%c0_18, %c0_19] : memref<1x8xf32, #tpu.memory_space<vmem>>, vector<1x8xf32>
    tpu.vector_store %arg8[%c0_18, %c0_19], %25 {strides = array<i32>} : memref<1x8xf32, #tpu.memory_space<vmem>>, vector<1x8xf32>,
    return
  }
  func.func @transform_0(%arg0: i32) -> (i32, i32) {
    %c0_i32 = arith.constant 0 : i32
    %c0_i32_0 = arith.constant 0 : i32
    return %arg0, %c0_i32 : i32, i32
  }
  func.func @transform_1(%arg0: i32) -> (i32, i32) {
    %c0_i32 = arith.constant 0 : i32
    %c0_i32_0 = arith.constant 0 : i32
    %c0_i32_1 = arith.constant 0 : i32
    return %c0_i32, %c0_i32_0 : i32, i32
  }
  func.func @transform_2(%arg0: i32) -> (i32, i32) {
    %c0_i32 = arith.constant 0 : i32
    %c0_i32_0 = arith.constant 0 : i32
    %c0_i32_1 = arith.constant 0 : i32
    return %c0_i32, %c0_i32_0 : i32, i32
  }
  func.func @transform_3(%arg0: i32) -> (i32, i32) {
    %c0_i32 = arith.constant 0 : i32
    %c0_i32_0 = arith.constant 0 : i32
    %c0_i32_1 = arith.constant 0 : i32
    return %c0_i32, %c0_i32_0 : i32, i32
  }
  func.func @transform_4(%arg0: i32) -> (i32, i32) {
    %c0_i32 = arith.constant 0 : i32
    %c0_i32_0 = arith.constant 0 : i32
    %c0_i32_1 = arith.constant 0 : i32
    return %c0_i32, %c0_i32_0 : i32, i32
  }
  func.func @transform_5(%arg0: i32) -> (i32, i32) {
    %c0_i32 = arith.constant 0 : i32
    %c0_i32_0 = arith.constant 0 : i32
    %c0_i32_1 = arith.constant 0 : i32
    return %c0_i32, %c0_i32_0 : i32, i32
  }
  func.func @transform_6(%arg0: i32) -> (i32, i32) {
    %c0_i32 = arith.constant 0 : i32
    %c0_i32_0 = arith.constant 0 : i32
    %c0_i32_1 = arith.constant 0 : i32
    return %c0_i32, %c0_i32_0 : i32, i32
  }
  func.func @transform_7(%arg0: i32) -> (i32, i32) {
    %c0_i32 = arith.constant 0 : i32
    %c0_i32_0 = arith.constant 0 : i32
    return %c0_i32, %arg0 : i32, i32
  }
}

</mosaic_0001>

<llo_original>
// kernel: tpu_custom_call.1
$region0: #{tpu_custom_call.1}
  #allocation0 [shape = 'u32[]', space=smem, size = 0x4, offset = 0x4, fixed_abs, tag = 'smem constant byte address 0x4 - core index']
  #allocation1 [shape = 'u32[144,128]{1,0:T(1,128)}', space=vmem, size = 0x12000, scoped, tag = 'internal scratch']
  #allocation2 [shape = 'f32[1,1]{1,0:T(1,128)S(1)}', space=vmem, size = 0x200, scoped, tag = 'scoped memory for tpu_custom_call.1']
  %s0 = inlined_call_operand.vmem [shape: f32[8,1024], index: 0, kind: input, shape index: {}]
  %s1 = inlined_call_operand.vmem [shape: f32[1024,32], index: 1, kind: input, shape index: {}]
  %s2 = inlined_call_operand.vmem [shape: f32[1,32], index: 2, kind: input, shape index: {}]
  %s3 = inlined_call_operand.vmem [shape: f32[32,32], index: 3, kind: input, shape index: {}]
  %s4 = inlined_call_operand.vmem [shape: f32[1,32], index: 4, kind: input, shape index: {}]
  %s5 = inlined_call_operand.vmem [shape: f32[1,32], index: 5, kind: input, shape index: {}]
  %s6 = inlined_call_operand.<no memory space> [shape: f32[1,1], index: 6, kind: input, shape index: {}]
  %s7 = inlined_call_operand.hbm [shape: f32[1,8], index: 7, kind: output, shape index: {}]
  %s8 = sld [smem:[#allocation0]]
  $region38: #{tpu_custom_call.1} parent=0
    _
  %s10 = ssub.s32 1, %s8
  %s11 = scalar_select 0, %s10, %s8
  %v12 = vstv %s6
  %13 = vst [vmem:[#allocation2] sm:$0x1] %v12
  $region1: #{tpu_custom_call.1} parent=0
    #allocation3 [shape = 'u8[512]{0}', space=vmem, size = 0x400, scoped, tag = 'output window, operand 0, single buffered']
    #allocation4 [shape = 's32[1]{0}', space=sflag, size = 0x4, scoped, tag = 'scoped memory for tpu_custom_call.1']
    %14 = vsyncpa [#allocation4], 0
    // Predicated region
    $region2: #{tpu_custom_call.1} parent=1 // pred_check
      _
    $region3: #{tpu_custom_call.1} parent=1 // pred_check_branch
      %16 = sbr.rel (0) target = $region5
    $region4: #{tpu_custom_call.1} parent=1 // pred_region
      _
    $region5: #{tpu_custom_call.1} parent=1 // pred_fallthru
      _
    // Predicated region
    $region6: #{tpu_custom_call.1} parent=1 // pred_check
      _
    $region7: #{tpu_custom_call.1} parent=1 // pred_check_branch
      %18 = sbr.rel (0) target = $region9
    $region8: #{tpu_custom_call.1} parent=1 // pred_region
      _
    $region9: #{tpu_custom_call.1} parent=1 // pred_fallthru
      _
    // Predicated region
    $region10: #{tpu_custom_call.1} parent=1 // pred_check
      _
    $region11: #{tpu_custom_call.1} parent=1 // pred_check_branch
      %20 = sbr.rel (0) target = $region13
    $region12: #{tpu_custom_call.1} parent=1 // pred_region
      _
    $region13: #{tpu_custom_call.1} parent=1 // pred_fallthru
      _
    // Predicated region
    $region14: #{tpu_custom_call.1} parent=1 // pred_check
      _
    $region15: #{tpu_custom_call.1} parent=1 // pred_check_branch
      %22 = sbr.rel (0) target = $region17
    $region16: #{tpu_custom_call.1} parent=1 // pred_region
      _
    $region17: #{tpu_custom_call.1} parent=1 // pred_fallthru
      _
    // Predicated region
    $region18: #{tpu_custom_call.1} parent=1 // pred_check
      _
    $region19: #{tpu_custom_call.1} parent=1 // pred_check_branch
      %24 = sbr.rel (0) target = $region21
    $region20: #{tpu_custom_call.1} parent=1 // pred_region
      _
    $region21: #{tpu_custom_call.1} parent=1 // pred_fallthru
      _
    // Predicated region
    $region22: #{tpu_custom_call.1} parent=1 // pred_check
      _
    $region23: #{tpu_custom_call.1} parent=1 // pred_check_branch
      %26 = sbr.rel (0) target = $region25
    $region24: #{tpu_custom_call.1} parent=1 // pred_region
      _
    $region25: #{tpu_custom_call.1} parent=1 // pred_fallthru
      _
    // Predicated region
    $region26: #{tpu_custom_call.1} parent=1 // pred_check
      _
    $region27: #{tpu_custom_call.1} parent=1 // pred_check_branch
      %28 = sbr.rel (0) target = $region29
    $region28: #{tpu_custom_call.1} parent=1 // pred_region
      _
    $region29: #{tpu_custom_call.1} parent=1 // pred_fallthru
      _
    %v29 = vld [vmem:[%s0] sm:$0xff]
    %v30 = vld [vmem:[%s0 + $0x8] sm:$0xff]
    %v31 = vld [vmem:[%s0 + $0x10] sm:$0xff]
    %v32 = vld [vmem:[%s0 + $0x18] sm:$0xff]
    %v33 = vld [vmem:[%s0 + $0x20] sm:$0xff]
    %v34 = vld [vmem:[%s0 + $0x28] sm:$0xff]
    %v35 = vld [vmem:[%s0 + $0x30] sm:$0xff]
    %v36 = vld [vmem:[%s0 + $0x38] sm:$0xff]
    %v37 = vld [vmem:[%s1] sm:$0xff]
    %v38 = vld [vmem:[%s1 + $0x8] sm:$0xff]
    %v39 = vld [vmem:[%s1 + $0x10] sm:$0xff]
    %v40 = vld [vmem:[%s1 + $0x18] sm:$0xff]
    %v41 = vld [vmem:[%s1 + $0x20] sm:$0xff]
    %v42 = vld [vmem:[%s1 + $0x28] sm:$0xff]
    %v43 = vld [vmem:[%s1 + $0x30] sm:$0xff]
    %v44 = vld [vmem:[%s1 + $0x38] sm:$0xff]
    %v45 = vld [vmem:[%s1 + $0x40] sm:$0xff]
    %v46 = vld [vmem:[%s1 + $0x48] sm:$0xff]
    %v47 = vld [vmem:[%s1 + $0x50] sm:$0xff]
    %v48 = vld [vmem:[%s1 + $0x58] sm:$0xff]
    %v49 = vld [vmem:[%s1 + $0x60] sm:$0xff]
    %v50 = vld [vmem:[%s1 + $0x68] sm:$0xff]
    %v51 = vld [vmem:[%s1 + $0x70] sm:$0xff]
    %v52 = vld [vmem:[%s1 + $0x78] sm:$0xff]
    %v53 = vld [vmem:[%s1 + $0x80] sm:$0xff]
    %v54 = vld [vmem:[%s1 + $0x88] sm:$0xff]
    %v55 = vld [vmem:[%s1 + $0x90] sm:$0xff]
    %v56 = vld [vmem:[%s1 + $0x98] sm:$0xff]
    %v57 = vld [vmem:[%s1 + $0xa0] sm:$0xff]
    %v58 = vld [vmem:[%s1 + $0xa8] sm:$0xff]
    %v59 = vld [vmem:[%s1 + $0xb0] sm:$0xff]
    %v60 = vld [vmem:[%s1 + $0xb8] sm:$0xff]
    %v61 = vld [vmem:[%s1 + $0xc0] sm:$0xff]
    %v62 = vld [vmem:[%s1 + $0xc8] sm:$0xff]
    %v63 = vld [vmem:[%s1 + $0xd0] sm:$0xff]
    %v64 = vld [vmem:[%s1 + $0xd8] sm:$0xff]
    %v65 = vld [vmem:[%s1 + $0xe0] sm:$0xff]
    %v66 = vld [vmem:[%s1 + $0xe8] sm:$0xff]
    %v67 = vld [vmem:[%s1 + $0xf0] sm:$0xff]
    %v68 = vld [vmem:[%s1 + $0xf8] sm:$0xff]
    %v69 = vld [vmem:[%s1 + $0x100] sm:$0xff]
    %v70 = vld [vmem:[%s1 + $0x108] sm:$0xff]
    %v71 = vld [vmem:[%s1 + $0x110] sm:$0xff]
    %v72 = vld [vmem:[%s1 + $0x118] sm:$0xff]
    %v73 = vld [vmem:[%s1 + $0x120] sm:$0xff]
    %v74 = vld [vmem:[%s1 + $0x128] sm:$0xff]
    %v75 = vld [vmem:[%s1 + $0x130] sm:$0xff]
    %v76 = vld [vmem:[%s1 + $0x138] sm:$0xff]
    %v77 = vld [vmem:[%s1 + $0x140] sm:$0xff]
    %v78 = vld [vmem:[%s1 + $0x148] sm:$0xff]
    %v79 = vld [vmem:[%s1 + $0x150] sm:$0xff]
    %v80 = vld [vmem:[%s1 + $0x158] sm:$0xff]
    %v81 = vld [vmem:[%s1 + $0x160] sm:$0xff]
    %v82 = vld [vmem:[%s1 + $0x168] sm:$0xff]
    %v83 = vld [vmem:[%s1 + $0x170] sm:$0xff]
    %v84 = vld [vmem:[%s1 + $0x178] sm:$0xff]
    %v85 = vld [vmem:[%s1 + $0x180] sm:$0xff]
    %v86 = vld [vmem:[%s1 + $0x188] sm:$0xff]
    %v87 = vld [vmem:[%s1 + $0x190] sm:$0xff]
    %v88 = vld [vmem:[%s1 + $0x198] sm:$0xff]
    %v89 = vld [vmem:[%s1 + $0x1a0] sm:$0xff]
    %v90 = vld [vmem:[%s1 + $0x1a8] sm:$0xff]
    %v91 = vld [vmem:[%s1 + $0x1b0] sm:$0xff]
    %v92 = vld [vmem:[%s1 + $0x1b8] sm:$0xff]
    %v93 = vld [vmem:[%s1 + $0x1c0] sm:$0xff]
    %v94 = vld [vmem:[%s1 + $0x1c8] sm:$0xff]
    %v95 = vld [vmem:[%s1 + $0x1d0] sm:$0xff]
    %v96 = vld [vmem:[%s1 + $0x1d8] sm:$0xff]
    %v97 = vld [vmem:[%s1 + $0x1e0] sm:$0xff]
    %v98 = vld [vmem:[%s1 + $0x1e8] sm:$0xff]
    %v99 = vld [vmem:[%s1 + $0x1f0] sm:$0xff]
    %v100 = vld [vmem:[%s1 + $0x1f8] sm:$0xff]
    %v101 = vld [vmem:[%s1 + $0x200] sm:$0xff]
    %v102 = vld [vmem:[%s1 + $0x208] sm:$0xff]
    %v103 = vld [vmem:[%s1 + $0x210] sm:$0xff]
    %v104 = vld [vmem:[%s1 + $0x218] sm:$0xff]
    %v105 = vld [vmem:[%s1 + $0x220] sm:$0xff]
    %v106 = vld [vmem:[%s1 + $0x228] sm:$0xff]
    %v107 = vld [vmem:[%s1 + $0x230] sm:$0xff]
    %v108 = vld [vmem:[%s1 + $0x238] sm:$0xff]
    %v109 = vld [vmem:[%s1 + $0x240] sm:$0xff]
    %v110 = vld [vmem:[%s1 + $0x248] sm:$0xff]
    %v111 = vld [vmem:[%s1 + $0x250] sm:$0xff]
    %v112 = vld [vmem:[%s1 + $0x258] sm:$0xff]
    %v113 = vld [vmem:[%s1 + $0x260] sm:$0xff]
    %v114 = vld [vmem:[%s1 + $0x268] sm:$0xff]
    %v115 = vld [vmem:[%s1 + $0x270] sm:$0xff]
    %v116 = vld [vmem:[%s1 + $0x278] sm:$0xff]
    %v117 = vld [vmem:[%s1 + $0x280] sm:$0xff]
    %v118 = vld [vmem:[%s1 + $0x288] sm:$0xff]
    %v119 = vld [vmem:[%s1 + $0x290] sm:$0xff]
    %v120 = vld [vmem:[%s1 + $0x298] sm:$0xff]
    %v121 = vld [vmem:[%s1 + $0x2a0] sm:$0xff]
    %v122 = vld [vmem:[%s1 + $0x2a8] sm:$0xff]
    %v123 = vld [vmem:[%s1 + $0x2b0] sm:$0xff]
    %v124 = vld [vmem:[%s1 + $0x2b8] sm:$0xff]
    %v125 = vld [vmem:[%s1 + $0x2c0] sm:$0xff]
    %v126 = vld [vmem:[%s1 + $0x2c8] sm:$0xff]
    %v127 = vld [vmem:[%s1 + $0x2d0] sm:$0xff]
    %v128 = vld [vmem:[%s1 + $0x2d8] sm:$0xff]
    %v129 = vld [vmem:[%s1 + $0x2e0] sm:$0xff]
    %v130 = vld [vmem:[%s1 + $0x2e8] sm:$0xff]
    %v131 = vld [vmem:[%s1 + $0x2f0] sm:$0xff]
    %v132 = vld [vmem:[%s1 + $0x2f8] sm:$0xff]
    %v133 = vld [vmem:[%s1 + $0x300] sm:$0xff]
    %v134 = vld [vmem:[%s1 + $0x308] sm:$0xff]
    %v135 = vld [vmem:[%s1 + $0x310] sm:$0xff]
    %v136 = vld [vmem:[%s1 + $0x318] sm:$0xff]
    %v137 = vld [vmem:[%s1 + $0x320] sm:$0xff]
    %v138 = vld [vmem:[%s1 + $0x328] sm:$0xff]
    %v139 = vld [vmem:[%s1 + $0x330] sm:$0xff]
    %v140 = vld [vmem:[%s1 + $0x338] sm:$0xff]
    %v141 = vld [vmem:[%s1 + $0x340] sm:$0xff]
    %v142 = vld [vmem:[%s1 + $0x348] sm:$0xff]
    %v143 = vld [vmem:[%s1 + $0x350] sm:$0xff]
    %v144 = vld [vmem:[%s1 + $0x358] sm:$0xff]
    %v145 = vld [vmem:[%s1 + $0x360] sm:$0xff]
    %v146 = vld [vmem:[%s1 + $0x368] sm:$0xff]
    %v147 = vld [vmem:[%s1 + $0x370] sm:$0xff]
    %v148 = vld [vmem:[%s1 + $0x378] sm:$0xff]
    %v149 = vld [vmem:[%s1 + $0x380] sm:$0xff]
    %v150 = vld [vmem:[%s1 + $0x388] sm:$0xff]
    %v151 = vld [vmem:[%s1 + $0x390] sm:$0xff]
    %v152 = vld [vmem:[%s1 + $0x398] sm:$0xff]
    %v153 = vld [vmem:[%s1 + $0x3a0] sm:$0xff]
    %v154 = vld [vmem:[%s1 + $0x3a8] sm:$0xff]
    %v155 = vld [vmem:[%s1 + $0x3b0] sm:$0xff]
    %v156 = vld [vmem:[%s1 + $0x3b8] sm:$0xff]
    %v157 = vld [vmem:[%s1 + $0x3c0] sm:$0xff]
    %v158 = vld [vmem:[%s1 + $0x3c8] sm:$0xff]
    %v159 = vld [vmem:[%s1 + $0x3d0] sm:$0xff]
    %v160 = vld [vmem:[%s1 + $0x3d8] sm:$0xff]
    %v161 = vld [vmem:[%s1 + $0x3e0] sm:$0xff]
    %v162 = vld [vmem:[%s1 + $0x3e8] sm:$0xff]
    %v163 = vld [vmem:[%s1 + $0x3f0] sm:$0xff]
    %v164 = vld [vmem:[%s1 + $0x3f8] sm:$0xff]
    %v165 = vld [vmem:[%s2] sm:$0x1]
    %v167 = vlaneseq
    %v168 = vshrl.u32 %v167, 7
    %v169 = vsub.s32 0, %v168
    %v170 = vrot.slane %v165, %v169
    %172 = vmatprep.subr.mxu0 0.0
    %173 = vmatpush1.msra.mxu0 %v37
    %174 = vmatprep.subr.mxu0 0.0
    %175 = vmatpush1.msra.mxu0 %v38
    %176 = vmatprep.subr.mxu0 0.0
    %177 = vmatpush1.msra.mxu0 %v39
    %178 = vmatprep.subr.mxu0 0.0
    %179 = vmatpush1.msra.mxu0 %v40
    %180 = vmatprep.subr.mxu0 0.0
    %181 = vmatpush1.msra.mxu0 %v41
    %182 = vmatprep.subr.mxu0 0.0
    %183 = vmatpush1.msra.mxu0 %v42
    %184 = vmatprep.subr.mxu0 0.0
    %185 = vmatpush1.msra.mxu0 %v43
    %186 = vmatprep.subr.mxu0 0.0
    %187 = vmatpush1.msra.mxu0 %v44
    %188 = vmatprep.subr.mxu0 0.0
    %189 = vmatpush1.msra.mxu0 %v45
    %190 = vmatprep.subr.mxu0 0.0
    %191 = vmatpush1.msra.mxu0 %v46
    %192 = vmatprep.subr.mxu0 0.0
    %193 = vmatpush1.msra.mxu0 %v47
    %194 = vmatprep.subr.mxu0 0.0
    %195 = vmatpush1.msra.mxu0 %v48
    %196 = vmatprep.subr.mxu0 0.0
    %197 = vmatpush1.msra.mxu0 %v49
    %198 = vmatprep.subr.mxu0 0.0
    %199 = vmatpush1.msra.mxu0 %v50
    %200 = vmatprep.subr.mxu0 0.0
    %201 = vmatpush1.msra.mxu0 %v51
    %202 = vmatprep.subr.mxu0 0.0
    %203 = vmatpush1.msra.mxu0 %v52
    %204 = vmatprep.subr.mxu0 0.0
    %205 = vmatpush1.msra.mxu0 %v53
    %206 = vmatprep.subr.mxu0 0.0
    %207 = vmatpush1.msra.mxu0 %v54
    %208 = vmatprep.subr.mxu0 0.0
    %209 = vmatpush1.msra.mxu0 %v55
    %210 = vmatprep.subr.mxu0 0.0
    %211 = vmatpush1.msra.mxu0 %v56
    %212 = vmatprep.subr.mxu0 0.0
    %213 = vmatpush1.msra.mxu0 %v57
    %214 = vmatprep.subr.mxu0 0.0
    %215 = vmatpush1.msra.mxu0 %v58
    %216 = vmatprep.subr.mxu0 0.0
    %217 = vmatpush1.msra.mxu0 %v59
    %218 = vmatprep.subr.mxu0 0.0
    %219 = vmatpush1.msra.mxu0 %v60
    %220 = vmatprep.subr.mxu0 0.0
    %221 = vmatpush1.msra.mxu0 %v61
    %222 = vmatprep.subr.mxu0 0.0
    %223 = vmatpush1.msra.mxu0 %v62
    %224 = vmatprep.subr.mxu0 0.0
    %225 = vmatpush1.msra.mxu0 %v63
    %226 = vmatprep.subr.mxu0 0.0
    %227 = vmatpush1.msra.mxu0 %v64
    %228 = vmatprep.subr.mxu0 0.0
    %229 = vmatpush1.msra.mxu0 %v65
    %230 = vmatprep.subr.mxu0 0.0
    %231 = vmatpush1.msra.mxu0 %v66
    %232 = vmatprep.subr.mxu0 0.0
    %233 = vmatpush1.msra.mxu0 %v67
    %234 = vmatprep.subr.mxu0 0.0
    %235 = vmatpush1.msra.mxu0 %v68
    %236 = vmatprep.mubr.f32.mxu0 %v30
    %237 = vmatmul.mubr.f32.gmra.mrb[0].mxu0 %v29
    %v238 = vpop.f32.mrb[0].mxu0
    %v239 = vadd.f32 %v170, %v238
    %v240 = vpop.f32.mrb[0].mxu0
    %241 = vdwg.mxu0
    %242 = vmatprep.subr.mxu0 0.0
    %243 = vmatpush1.msra.mxu0 %v69
    %244 = vmatprep.subr.mxu0 0.0
    %245 = vmatpush1.msra.mxu0 %v70
    %246 = vmatprep.subr.mxu0 0.0
    %247 = vmatpush1.msra.mxu0 %v71
    %248 = vmatprep.subr.mxu0 0.0
    %249 = vmatpush1.msra.mxu0 %v72
    %250 = vmatprep.subr.mxu0 0.0
    %251 = vmatpush1.msra.mxu0 %v73
    %252 = vmatprep.subr.mxu0 0.0
    %253 = vmatpush1.msra.mxu0 %v74
    %254 = vmatprep.subr.mxu0 0.0
    %255 = vmatpush1.msra.mxu0 %v75
    %256 = vmatprep.subr.mxu0 0.0
    %257 = vmatpush1.msra.mxu0 %v76
    %258 = vmatprep.subr.mxu0 0.0
    %259 = vmatpush1.msra.mxu0 %v77
    %260 = vmatprep.subr.mxu0 0.0
    %261 = vmatpush1.msra.mxu0 %v78
    %262 = vmatprep.subr.mxu0 0.0
    %263 = vmatpush1.msra.mxu0 %v79
    %264 = vmatprep.subr.mxu0 0.0
    %265 = vmatpush1.msra.mxu0 %v80
    %266 = vmatprep.subr.mxu0 0.0
    %267 = vmatpush1.msra.mxu0 %v81
    %268 = vmatprep.subr.mxu0 0.0
    %269 = vmatpush1.msra.mxu0 %v82
    %270 = vmatprep.subr.mxu0 0.0
    %271 = vmatpush1.msra.mxu0 %v83
    %272 = vmatprep.subr.mxu0 0.0
    %273 = vmatpush1.msra.mxu0 %v84
    %274 = vmatprep.subr.mxu0 0.0
    %275 = vmatpush1.msra.mxu0 %v85
    %276 = vmatprep.subr.mxu0 0.0
    %277 = vmatpush1.msra.mxu0 %v86
    %278 = vmatprep.subr.mxu0 0.0
    %279 = vmatpush1.msra.mxu0 %v87
    %280 = vmatprep.subr.mxu0 0.0
    %281 = vmatpush1.msra.mxu0 %v88
    %282 = vmatprep.subr.mxu0 0.0
    %283 = vmatpush1.msra.mxu0 %v89
    %284 = vmatprep.subr.mxu0 0.0
    %285 = vmatpush1.msra.mxu0 %v90
    %286 = vmatprep.subr.mxu0 0.0
    %287 = vmatpush1.msra.mxu0 %v91
    %288 = vmatprep.subr.mxu0 0.0
    %289 = vmatpush1.msra.mxu0 %v92
    %290 = vmatprep.subr.mxu0 0.0
    %291 = vmatpush1.msra.mxu0 %v93
    %292 = vmatprep.subr.mxu0 0.0
    %293 = vmatpush1.msra.mxu0 %v94
    %294 = vmatprep.subr.mxu0 0.0
    %295 = vmatpush1.msra.mxu0 %v95
    %296 = vmatprep.subr.mxu0 0.0
    %297 = vmatpush1.msra.mxu0 %v96
    %298 = vmatprep.subr.mxu0 0.0
    %299 = vmatpush1.msra.mxu0 %v97
    %300 = vmatprep.subr.mxu0 0.0
    %301 = vmatpush1.msra.mxu0 %v98
    %302 = vmatprep.subr.mxu0 0.0
    %303 = vmatpush1.msra.mxu0 %v99
    %304 = vmatprep.subr.mxu0 0.0
    %305 = vmatpush1.msra.mxu0 %v100
    %306 = vmatprep.mubr.f32.mxu0 %v32
    %307 = vmatmul.mubr.f32.gmra.mrb[0].mxu0 %v31
    %v308 = vpop.f32.mrb[0].mxu0
    %v309 = vadd.f32 %v239, %v308
    %v310 = vpop.f32.mrb[0].mxu0
    %311 = vdwg.mxu0
    %312 = vmatprep.subr.mxu0 0.0
    %313 = vmatpush1.msra.mxu0 %v101
    %314 = vmatprep.subr.mxu0 0.0
    %315 = vmatpush1.msra.mxu0 %v102
    %316 = vmatprep.subr.mxu0 0.0
    %317 = vmatpush1.msra.mxu0 %v103
    %318 = vmatprep.subr.mxu0 0.0
    %319 = vmatpush1.msra.mxu0 %v104
    %320 = vmatprep.subr.mxu0 0.0
    %321 = vmatpush1.msra.mxu0 %v105
    %322 = vmatprep.subr.mxu0 0.0
    %323 = vmatpush1.msra.mxu0 %v106
    %324 = vmatprep.subr.mxu0 0.0
    %325 = vmatpush1.msra.mxu0 %v107
    %326 = vmatprep.subr.mxu0 0.0
    %327 = vmatpush1.msra.mxu0 %v108
    %328 = vmatprep.subr.mxu0 0.0
    %329 = vmatpush1.msra.mxu0 %v109
    %330 = vmatprep.subr.mxu0 0.0
    %331 = vmatpush1.msra.mxu0 %v110
    %332 = vmatprep.subr.mxu0 0.0
    %333 = vmatpush1.msra.mxu0 %v111
    %334 = vmatprep.subr.mxu0 0.0
    %335 = vmatpush1.msra.mxu0 %v112
    %336 = vmatprep.subr.mxu0 0.0
    %337 = vmatpush1.msra.mxu0 %v113
    %338 = vmatprep.subr.mxu0 0.0
    %339 = vmatpush1.msra.mxu0 %v114
    %340 = vmatprep.subr.mxu0 0.0
    %341 = vmatpush1.msra.mxu0 %v115
    %342 = vmatprep.subr.mxu0 0.0
    %343 = vmatpush1.msra.mxu0 %v116
    %344 = vmatprep.subr.mxu0 0.0
    %345 = vmatpush1.msra.mxu0 %v117
    %346 = vmatprep.subr.mxu0 0.0
    %347 = vmatpush1.msra.mxu0 %v118
    %348 = vmatprep.subr.mxu0 0.0
    %349 = vmatpush1.msra.mxu0 %v119
    %350 = vmatprep.subr.mxu0 0.0
    %351 = vmatpush1.msra.mxu0 %v120
    %352 = vmatprep.subr.mxu0 0.0
    %353 = vmatpush1.msra.mxu0 %v121
    %354 = vmatprep.subr.mxu0 0.0
    %355 = vmatpush1.msra.mxu0 %v122
    %356 = vmatprep.subr.mxu0 0.0
    %357 = vmatpush1.msra.mxu0 %v123
    %358 = vmatprep.subr.mxu0 0.0
    %359 = vmatpush1.msra.mxu0 %v124
    %360 = vmatprep.subr.mxu0 0.0
    %361 = vmatpush1.msra.mxu0 %v125
    %362 = vmatprep.subr.mxu0 0.0
    %363 = vmatpush1.msra.mxu0 %v126
    %364 = vmatprep.subr.mxu0 0.0
    %365 = vmatpush1.msra.mxu0 %v127
    %366 = vmatprep.subr.mxu0 0.0
    %367 = vmatpush1.msra.mxu0 %v128
    %368 = vmatprep.subr.mxu0 0.0
    %369 = vmatpush1.msra.mxu0 %v129
    %370 = vmatprep.subr.mxu0 0.0
    %371 = vmatpush1.msra.mxu0 %v130
    %372 = vmatprep.subr.mxu0 0.0
    %373 = vmatpush1.msra.mxu0 %v131
    %374 = vmatprep.subr.mxu0 0.0
    %375 = vmatpush1.msra.mxu0 %v132
    %376 = vmatprep.mubr.f32.mxu0 %v34
    %377 = vmatmul.mubr.f32.gmra.mrb[0].mxu0 %v33
    %v378 = vpop.f32.mrb[0].mxu0
    %v379 = vadd.f32 %v309, %v378
    %v380 = vpop.f32.mrb[0].mxu0
    %381 = vdwg.mxu0
    %382 = vmatprep.subr.mxu0 0.0
    %383 = vmatpush1.msra.mxu0 %v133
    %384 = vmatprep.subr.mxu0 0.0
    %385 = vmatpush1.msra.mxu0 %v134
    %386 = vmatprep.subr.mxu0 0.0
    %387 = vmatpush1.msra.mxu0 %v135
    %388 = vmatprep.subr.mxu0 0.0
    %389 = vmatpush1.msra.mxu0 %v136
    %390 = vmatprep.subr.mxu0 0.0
    %391 = vmatpush1.msra.mxu0 %v137
    %392 = vmatprep.subr.mxu0 0.0
    %393 = vmatpush1.msra.mxu0 %v138
    %394 = vmatprep.subr.mxu0 0.0
    %395 = vmatpush1.msra.mxu0 %v139
    %396 = vmatprep.subr.mxu0 0.0
    %397 = vmatpush1.msra.mxu0 %v140
    %398 = vmatprep.subr.mxu0 0.0
    %399 = vmatpush1.msra.mxu0 %v141
    %400 = vmatprep.subr.mxu0 0.0
    %401 = vmatpush1.msra.mxu0 %v142
    %402 = vmatprep.subr.mxu0 0.0
    %403 = vmatpush1.msra.mxu0 %v143
    %404 = vmatprep.subr.mxu0 0.0
    %405 = vmatpush1.msra.mxu0 %v144
    %406 = vmatprep.subr.mxu0 0.0
    %407 = vmatpush1.msra.mxu0 %v145
    %408 = vmatprep.subr.mxu0 0.0
    %409 = vmatpush1.msra.mxu0 %v146
    %410 = vmatprep.subr.mxu0 0.0
    %411 = vmatpush1.msra.mxu0 %v147
    %412 = vmatprep.subr.mxu0 0.0
    %413 = vmatpush1.msra.mxu0 %v148
    %414 = vmatprep.subr.mxu0 0.0
    %415 = vmatpush1.msra.mxu0 %v149
    %416 = vmatprep.subr.mxu0 0.0
    %417 = vmatpush1.msra.mxu0 %v150
    %418 = vmatprep.subr.mxu0 0.0
    %419 = vmatpush1.msra.mxu0 %v151
    %420 = vmatprep.subr.mxu0 0.0
    %421 = vmatpush1.msra.mxu0 %v152
    %422 = vmatprep.subr.mxu0 0.0
    %423 = vmatpush1.msra.mxu0 %v153
    %424 = vmatprep.subr.mxu0 0.0
    %425 = vmatpush1.msra.mxu0 %v154
    %426 = vmatprep.subr.mxu0 0.0
    %427 = vmatpush1.msra.mxu0 %v155
    %428 = vmatprep.subr.mxu0 0.0
    %429 = vmatpush1.msra.mxu0 %v156
    %430 = vmatprep.subr.mxu0 0.0
    %431 = vmatpush1.msra.mxu0 %v157
    %432 = vmatprep.subr.mxu0 0.0
    %433 = vmatpush1.msra.mxu0 %v158
    %434 = vmatprep.subr.mxu0 0.0
    %435 = vmatpush1.msra.mxu0 %v159
    %436 = vmatprep.subr.mxu0 0.0
    %437 = vmatpush1.msra.mxu0 %v160
    %438 = vmatprep.subr.mxu0 0.0
    %439 = vmatpush1.msra.mxu0 %v161
    %440 = vmatprep.subr.mxu0 0.0
    %441 = vmatpush1.msra.mxu0 %v162
    %442 = vmatprep.subr.mxu0 0.0
    %443 = vmatpush1.msra.mxu0 %v163
    %444 = vmatprep.subr.mxu0 0.0
    %445 = vmatpush1.msra.mxu0 %v164
    %446 = vmatprep.mubr.f32.mxu0 %v36
    %447 = vmatmul.mubr.f32.gmra.mrb[0].mxu0 %v35
    %v448 = vpop.f32.mrb[0].mxu0
    %v449 = vadd.f32 %v379, %v448
    %v450 = vpop.f32.mrb[0].mxu0
    %451 = vdwg.mxu0
    %v452 = vmax.f32 %v449, 0.0
    %v453 = vld [vmem:[%s3] sm:$0xff]
    %v454 = vld [vmem:[%s3 + $0x8] sm:$0xff]
    %v455 = vld [vmem:[%s3 + $0x10] sm:$0xff]
    %v456 = vld [vmem:[%s3 + $0x18] sm:$0xff]
    %v457 = vld [vmem:[%s4] sm:$0x1]
    %v459 = vlaneseq
    %v460 = vshrl.u32 %v459, 7
    %v461 = vsub.s32 0, %v460
    %v462 = vrot.slane %v457, %v461
    %vm464 = vcmask 261120
    %v466 = vsel %vm464, %v452, 0
    %468 = vmatprep.subr.mxu0 0.0
    %469 = vmatpush1.msra.mxu0 %v453
    %470 = vmatprep.subr.mxu0 0.0
    %471 = vmatpush1.msra.mxu0 %v454
    %472 = vmatprep.subr.mxu0 0.0
    %473 = vmatpush1.msra.mxu0 %v455
    %474 = vmatprep.subr.mxu0 0.0
    %475 = vmatpush1.msra.mxu0 %v456
    %476 = vmatprep.subr.mxu0 0.0
    %477 = vmatpush1.msra.mxu0 0.0
    %478 = vmatprep.subr.mxu0 0.0
    %479 = vmatpush1.msra.mxu0 0.0
    %480 = vmatprep.subr.mxu0 0.0
    %481 = vmatpush1.msra.mxu0 0.0
    %482 = vmatprep.subr.mxu0 0.0
    %483 = vmatpush1.msra.mxu0 0.0
    %484 = vmatprep.subr.mxu0 0.0
    %485 = vmatpush1.msra.mxu0 0.0
    %486 = vmatprep.subr.mxu0 0.0
    %487 = vmatpush1.msra.mxu0 0.0
    %488 = vmatprep.subr.mxu0 0.0
    %489 = vmatpush1.msra.mxu0 0.0
    %490 = vmatprep.subr.mxu0 0.0
    %491 = vmatpush1.msra.mxu0 0.0
    %492 = vmatprep.subr.mxu0 0.0
    %493 = vmatpush1.msra.mxu0 0.0
    %494 = vmatprep.subr.mxu0 0.0
    %495 = vmatpush1.msra.mxu0 0.0
    %496 = vmatprep.subr.mxu0 0.0
    %497 = vmatpush1.msra.mxu0 0.0
    %498 = vmatprep.subr.mxu0 0.0
    %499 = vmatpush1.msra.mxu0 0.0
    %500 = vmatprep.subr.mxu0 0.0
    %501 = vmatpush1.msra.mxu0 0.0
    %502 = vmatprep.subr.mxu0 0.0
    %503 = vmatpush1.msra.mxu0 0.0
    %504 = vmatprep.subr.mxu0 0.0
    %505 = vmatpush1.msra.mxu0 0.0
    %506 = vmatprep.subr.mxu0 0.0
    %507 = vmatpush1.msra.mxu0 0.0
    %508 = vmatprep.subr.mxu0 0.0
    %509 = vmatpush1.msra.mxu0 0.0
    %510 = vmatprep.subr.mxu0 0.0
    %511 = vmatpush1.msra.mxu0 0.0
    %512 = vmatprep.subr.mxu0 0.0
    %513 = vmatpush1.msra.mxu0 0.0
    %514 = vmatprep.subr.mxu0 0.0
    %515 = vmatpush1.msra.mxu0 0.0
    %516 = vmatprep.subr.mxu0 0.0
    %517 = vmatpush1.msra.mxu0 0.0
    %518 = vmatprep.subr.mxu0 0.0
    %519 = vmatpush1.msra.mxu0 0.0
    %520 = vmatprep.subr.mxu0 0.0
    %521 = vmatpush1.msra.mxu0 0.0
    %522 = vmatprep.subr.mxu0 0.0
    %523 = vmatpush1.msra.mxu0 0.0
    %524 = vmatprep.subr.mxu0 0.0
    %525 = vmatpush1.msra.mxu0 0.0
    %526 = vmatprep.subr.mxu0 0.0
    %527 = vmatpush1.msra.mxu0 0.0
    %528 = vmatprep.subr.mxu0 0.0
    %529 = vmatpush1.msra.mxu0 0.0
    %530 = vmatprep.subr.mxu0 0.0
    %531 = vmatpush1.msra.mxu0 0.0
    %532 = vmatprep.mubr.f32.mxu0 0.0
    %533 = vmatmul.mubr.f32.gmra.mrb[0].mxu0 %v466
    %v534 = vpop.f32.mrb[0].mxu0
    %v535 = vadd.f32 %v462, %v534
    %v536 = vpop.f32.mrb[0].mxu0
    %537 = vdwg.mxu0
    %v538 = vmax.f32 %v535, 0.0
    %v539 = vadd.f32 %v538, %v452
    %v540 = vld [vmem:[%s5] sm:$0x1]
    %v541 = vld [vmem:[#allocation2] sm:$0x1]
    %543 = vset.pattern.permute.xlu0 0
    %544 = vperm.xlu0 %543, %v541
    %v545 = vpop.permute.xlu0 %544
    %v547 = vlaneseq
    %v548 = vshrl.u32 %v547, 7
    %v549 = vsub.s32 0, %v548
    %v550 = vrot.slane %v545, %v549
    %v552 = vsel %vm464, %v540, 0
    %v555 = vsel %vm464, %v539, 0
    %557 = vmatprep.subr.mxu0 0.0
    %558 = vmatpush1.xpose.msra.mxu0 %v555
    %559 = vmatprep.subr.mxu0 0.0
    %560 = vmatpush1.xpose.msra.mxu0 0.0
    %561 = vmatprep.subr.mxu0 0.0
    %562 = vmatpush1.xpose.msra.mxu0 0.0
    %563 = vmatprep.subr.mxu0 0.0
    %564 = vmatpush1.xpose.msra.mxu0 0.0
    %565 = vmatprep.subr.mxu0 0.0
    %566 = vmatpush1.xpose.msra.mxu0 0.0
    %567 = vmatprep.subr.mxu0 0.0
    %568 = vmatpush1.xpose.msra.mxu0 0.0
    %569 = vmatprep.subr.mxu0 0.0
    %570 = vmatpush1.xpose.msra.mxu0 0.0
    %571 = vmatprep.subr.mxu0 0.0
    %572 = vmatpush1.xpose.msra.mxu0 0.0
    %573 = vmatprep.subr.mxu0 0.0
    %574 = vmatpush1.xpose.msra.mxu0 0.0
    %575 = vmatprep.subr.mxu0 0.0
    %576 = vmatpush1.xpose.msra.mxu0 0.0
    %577 = vmatprep.subr.mxu0 0.0
    %578 = vmatpush1.xpose.msra.mxu0 0.0
    %579 = vmatprep.subr.mxu0 0.0
    %580 = vmatpush1.xpose.msra.mxu0 0.0
    %581 = vmatprep.subr.mxu0 0.0
    %582 = vmatpush1.xpose.msra.mxu0 0.0
    %583 = vmatprep.subr.mxu0 0.0
    %584 = vmatpush1.xpose.msra.mxu0 0.0
    %585 = vmatprep.subr.mxu0 0.0
    %586 = vmatpush1.xpose.msra.mxu0 0.0
    %587 = vmatprep.subr.mxu0 0.0
    %588 = vmatpush1.xpose.msra.mxu0 0.0
    %589 = vmatprep.subr.mxu0 0.0
    %590 = vmatpush1.xpose.msra.mxu0 0.0
    %591 = vmatprep.subr.mxu0 0.0
    %592 = vmatpush1.xpose.msra.mxu0 0.0
    %593 = vmatprep.subr.mxu0 0.0
    %594 = vmatpush1.xpose.msra.mxu0 0.0
    %595 = vmatprep.subr.mxu0 0.0
    %596 = vmatpush1.xpose.msra.mxu0 0.0
    %597 = vmatprep.subr.mxu0 0.0
    %598 = vmatpush1.xpose.msra.mxu0 0.0
    %599 = vmatprep.subr.mxu0 0.0
    %600 = vmatpush1.xpose.msra.mxu0 0.0
    %601 = vmatprep.subr.mxu0 0.0
    %602 = vmatpush1.xpose.msra.mxu0 0.0
    %603 = vmatprep.subr.mxu0 0.0
    %604 = vmatpush1.xpose.msra.mxu0 0.0
    %605 = vmatprep.subr.mxu0 0.0
    %606 = vmatpush1.xpose.msra.mxu0 0.0
    %607 = vmatprep.subr.mxu0 0.0
    %608 = vmatpush1.xpose.msra.mxu0 0.0
    %609 = vmatprep.subr.mxu0 0.0
    %610 = vmatpush1.xpose.msra.mxu0 0.0
    %611 = vmatprep.subr.mxu0 0.0
    %612 = vmatpush1.xpose.msra.mxu0 0.0
    %613 = vmatprep.subr.mxu0 0.0
    %614 = vmatpush1.xpose.msra.mxu0 0.0
    %615 = vmatprep.subr.mxu0 0.0
    %616 = vmatpush1.xpose.msra.mxu0 0.0
    %617 = vmatprep.subr.mxu0 0.0
    %618 = vmatpush1.xpose.msra.mxu0 0.0
    %619 = vmatprep.subr.mxu0 0.0
    %620 = vmatpush1.xpose.msra.mxu0 0.0
    %621 = vmatprep.mubr.f32.mxu0 0.0
    %622 = vmatmul.mubr.f32.gmra.mrb[0].mxu0 %v552
    %v623 = vpop.f32.mrb[0].mxu0
    %v624 = vadd.f32 %v550, %v623
    %v625 = vpop.f32.mrb[0].mxu0
    %626 = vdwg.mxu0
    %v627 = vxor.u32 %v624, 2147483648
    %v628 = vmul.f32 %v627, 1.442695
    %v629 = vpow.pop %v628
    %v630 = vadd.f32 %v629, 1.0
    %v631 = vrcp.pop %v630
    %v632 = vmul.f32 1.0, %v631
    %vm633 = vcmask 57344
    %634 = vst.msk [vmem:[#allocation3] sm:$0x1] %vm633, %v632
    // Predicated region
    $region30: #{tpu_custom_call.1} parent=1 // pred_check
      _
    $region31: #{tpu_custom_call.1} parent=1 // pred_check_branch
      %636 = sbr.rel (0) target = $region33
    $region32: #{tpu_custom_call.1} parent=1 // pred_region
      %s638 = ssub.s32 16, 16
      %639 = vsyncadd [#allocation4], %s638
      %s641 = sshll.u32 [#allocation3], 4
      %s642 = int_to_ptr.vmem [resolvable:$true] %s641
      %644 = dma.vmem_to_hbm [thread:$0]  %s642, 16, %s7, [#allocation4]
    $region33: #{tpu_custom_call.1} parent=1 // pred_fallthru
      _
    // Predicated region
    $region34: #{tpu_custom_call.1} parent=1 // pred_check
      _
    $region35: #{tpu_custom_call.1} parent=1 // pred_check_branch
      %646 = sbr.rel (0) target = $region37
    $region36: #{tpu_custom_call.1} parent=1 // pred_region
      %647 = dma.done [#allocation4], 16
    $region37: #{tpu_custom_call.1} parent=1 // pred_fallthru
      _
    %648 = vsyncpa [#allocation4], 1

</llo_original>
